<compile_context>
chip_gen: v7x
topology: tpu7x:2x2x1
jax: 0.10.0
libtpu: 0.0.40
codegen_flags: <defaults>
</compile_context>

<pallas_src>
import math
import jax
import jax.numpy as jnp
from jax.experimental import pallas as pl
from jax.experimental.pallas import tpu as pltpu


def _round_up(x, m):
    return (x + m - 1) // m * m


def _fused_embed_kernel(idx_ref, table_t_ref, out_ref):
    """Fused multi-field embedding lookup (transposed layout).

    idx_ref:     (F, TN)            int32   per-field indices, already offset
                                            into the fused vocab space.
    table_t_ref: (D_total, V_total) float32 fused (block-diagonal) table, T.
    out_ref:     (D_total, TN)      float32 concatenated embeddings, T.
    """
    idx = idx_ref[...]                                   # (F, TN)
    num_fields, tn = idx.shape
    d_total, v_total = table_t_ref.shape

    # Multi-hot^T: rows = fused vocab, columns = positions in this tile.
    # Vocab ranges are disjoint per field, so summing the per-field one-hots
    # gives exactly one 1 per (field, position).
    row = jax.lax.broadcasted_iota(jnp.int32, (v_total, tn), 0)   # (V, TN)
    multihot = jnp.zeros((v_total, tn), jnp.float32)
    for f in range(num_fields):          # static unroll, F is tiny
        multihot = multihot + (idx[f:f + 1, :] == row).astype(jnp.float32)

    # (D_total, V) @ (V, TN) -> (D_total, TN); lane dim of the store is TN.
    out_ref[...] = jnp.dot(
        table_t_ref[...], multihot, preferred_element_type=jnp.float32
    ).astype(out_ref.dtype)


def _fused_lookup(idx_fm, table_t, tn):
    """idx_fm: (F, N_pad) int32, table_t: (D_total, V_total) f32.

    Returns (D_total, N_pad) f32, N tiled by `tn` (multiple of 128).
    """
    num_fields, n_pad = idx_fm.shape
    d_total, v_total = table_t.shape
    assert n_pad % tn == 0
    grid = (n_pad // tn,)

    cost = pl.CostEstimate(
        flops=int(2 * n_pad * v_total * d_total),
        transcendentals=0,
        bytes_accessed=int(idx_fm.size * 4 + table_t.size * 4
                           + n_pad * d_total * 4),
    )

    return pl.pallas_call(
        _fused_embed_kernel,
        out_shape=jax.ShapeDtypeStruct((d_total, n_pad), jnp.float32),
        grid_spec=pltpu.PrefetchScalarGridSpec(
            num_scalar_prefetch=0,
            grid=grid,
            in_specs=[
                # Indices: lane-major (F, TN) tile marching along N.
                pl.BlockSpec((num_fields, tn), lambda i: (0, i)),
                # Fused table: constant index_map -> stays resident in VMEM.
                pl.BlockSpec((d_total, v_total), lambda i: (0, 0)),
            ],
            out_specs=pl.BlockSpec((d_total, tn), lambda i: (0, i)),
        ),
        compiler_params=pltpu.CompilerParams(
            dimension_semantics=("parallel",),
        ),
        cost_estimate=cost,
    )(idx_fm, table_t)


def xavier_uniform(key, shape, dtype=jnp.float32):
    """Matches torch.nn.init.xavier_uniform_ for a 2-D weight (V, D)."""
    fan_out, fan_in = shape[0], shape[1]
    bound = math.sqrt(6.0 / (fan_in + fan_out))
    return jax.random.uniform(key, shape, dtype, minval=-bound, maxval=bound)


class LinkFeatureEmbedding:
    """JAX/Pallas port of the PyTorch LinkFeatureEmbedding module."""

    def __init__(self, feature_ranges, embedding_dims, key):
        assert len(feature_ranges) == len(embedding_dims)
        self.num_fields = len(feature_ranges)
        keys = jax.random.split(key, self.num_fields)
        # nn.Embedding(num_embeddings=range + 1, embedding_dim=dim)
        self.tables = [
            xavier_uniform(k, (r + 1, d))
            for k, r, d in zip(keys, feature_ranges, embedding_dims)
        ]

        vocab_sizes = [t.shape[0] for t in self.tables]
        dims = [t.shape[1] for t in self.tables]
        self.v_total = sum(vocab_sizes)
        self.d_total = sum(dims)

        # Block-diagonal fused table: row (voff_f + idx) has field f's
        # embedding in columns [doff_f, doff_f + D_f) and zeros elsewhere.
        fused = jnp.zeros((self.v_total, self.d_total), jnp.float32)
        voffsets = []
        voff = doff = 0
        for t, v, d in zip(self.tables, vocab_sizes, dims):
            fused = fused.at[voff:voff + v, doff:doff + d].set(t)
            voffsets.append(voff)
            voff += v
            doff += d
        self.table_t = fused.T                              # (D_total, V_total)
        self.voffsets = jnp.asarray(voffsets, jnp.int32)    # (F,)

    def __call__(self, x):
        """x: int array of shape (batch, seq, num_fields)."""
        b, s, num_fields = x.shape
        assert num_fields == self.num_fields
        n = b * s

        # Shift each field's indices into the fused vocab space.
        # NOTE: like the reference kernel, out-of-range / negative indices
        # silently yield zero rows instead of raising (PyTorch would error).
        idx = x.astype(jnp.int32) + self.voffsets            # (B, S, F)
        idx_fm = idx.reshape(n, num_fields).T                # (F, N) lane-major

        tn = min(512, _round_up(n, 128))
        n_pad = _round_up(n, tn)
        if n_pad != n:
            idx_fm = jnp.pad(idx_fm, ((0, 0), (0, n_pad - n)))

        out_t = _fused_lookup(idx_fm, self.table_t, tn)      # (D_total, N_pad)
        return out_t[:, :n].T.reshape(b, s, self.d_total)    # (B, S, D_total)


if __name__ == "__main__":
    key = jax.random.PRNGKey(0)
    k_params, k_data = jax.random.split(key)

    feature_ranges = [10, 20, 5]    # vocab sizes = range + 1
    embedding_dims = [8, 16, 4]

    module = LinkFeatureEmbedding(feature_ranges, embedding_dims, k_params)

    batch, seq = 2, 8
    field_keys = jax.random.split(k_data, len(feature_ranges))
    fields = [
        jax.random.randint(fk, (batch, seq), 0, r + 1, dtype=jnp.int32)
        for fk, r in zip(field_keys, feature_ranges)
    ]
    x = jnp.stack(fields, axis=-1)  # (batch, seq, num_fields) int32

    out = module(x)
    out = jax.block_until_ready(out)

    # Sanity check against a plain-JAX reference (jnp.take gather + concat).
    ref = jnp.concatenate(
        [jnp.take(t, x[:, :, i], axis=0) for i, t in enumerate(module.tables)],
        axis=-1,
    )
    assert out.shape == (batch, seq, sum(embedding_dims))
    assert jnp.allclose(out, ref, atol=1e-6), "mismatch vs reference"

    print("KERNEL_OK")
</pallas_src>

<mosaic_0001>
module attributes {stable_mosaic.version = 11 : i64} {
  func.func @_fused_embed_kernel(%arg0: i32, %arg1: memref<3x128xi32, #tpu.memory_space<vmem>>, %arg2: memref<28x38xf32, #tpu.memory_space<vmem>>, %arg3: memref<28x128xf32, #tpu.memory_space<vmem>>) attributes {dimension_semantics = [#tpu.dimension_semantics<parallel>], iteration_bounds = array<i64: 1>, scalar_prefetch = 0 : i64, scratch_operands = 0 : i64, tpu.core_type = #tpu.core_type<tc>, window_params = [{transform_indices = @transform_0, window_bounds = array<i64: 3, 128>}, {pipeline_mode = #tpu.pipeline_mode<synchronous>, transform_indices = @transform_1, window_bounds = array<i64: 28, 38>}, {transform_indices = @transform_2, window_bounds = array<i64: 28, 128>}]} {
    %c0 = arith.constant 0 : index
    %c0_0 = arith.constant 0 : index
    %0 = vector.load %arg1[%c0, %c0_0] : memref<3x128xi32, #tpu.memory_space<vmem>>, vector<3x128xi32>
    %1 = tpu.iota {dimensions = array<i32: 0>} : vector<38x128xi32>
    %cst = arith.constant 0.000000e+00 : f32
    %2 = vector.broadcast %cst : f32 to vector<38x128xf32>
    %3 = vector.extract_strided_slice %0 {offsets = [0, 0], sizes = [1, 128], strides = [1, 1]} : vector<3x128xi32> to vector<1x128xi32>
    %4 = vector.broadcast %3 : vector<1x128xi32> to vector<38x128xi32>
    %5 = arith.cmpi eq, %4, %1 : vector<38x128xi32>
    %6 = arith.extui %5 : vector<38x128xi1> to vector<38x128xi32>
    %7 = arith.sitofp %6 : vector<38x128xi32> to vector<38x128xf32>
    %8 = arith.addf %2, %7 : vector<38x128xf32>
    %9 = vector.extract_strided_slice %0 {offsets = [1, 0], sizes = [1, 128], strides = [1, 1]} : vector<3x128xi32> to vector<1x128xi32>
    %10 = vector.broadcast %9 : vector<1x128xi32> to vector<38x128xi32>
    %11 = arith.cmpi eq, %10, %1 : vector<38x128xi32>
    %12 = arith.extui %11 : vector<38x128xi1> to vector<38x128xi32>
    %13 = arith.sitofp %12 : vector<38x128xi32> to vector<38x128xf32>
    %14 = arith.addf %8, %13 : vector<38x128xf32>
    %15 = vector.extract_strided_slice %0 {offsets = [2, 0], sizes = [1, 128], strides = [1, 1]} : vector<3x128xi32> to vector<1x128xi32>
    %16 = vector.broadcast %15 : vector<1x128xi32> to vector<38x128xi32>
    %17 = arith.cmpi eq, %16, %1 : vector<38x128xi32>
    %18 = arith.extui %17 : vector<38x128xi1> to vector<38x128xi32>
    %19 = arith.sitofp %18 : vector<38x128xi32> to vector<38x128xf32>
    %20 = arith.addf %14, %19 : vector<38x128xf32>
    %c0_1 = arith.constant 0 : index
    %c0_2 = arith.constant 0 : index
    %21 = vector.load %arg2[%c0_1, %c0_2] : memref<28x38xf32, #tpu.memory_space<vmem>>, vector<28x38xf32>
    %cst_3 = arith.constant dense<0.000000e+00> : vector<28x128xf32>
    %22 = tpu.matmul %21, %20, %cst_3 {dimension_numbers = #tpu.dot_dimension_numbers<[1], [0], [0], [1], [0, 0, 1, 1], [], []>} : vector<28x38xf32>, vector<38x128xf32>, vector<28x128xf32> -> vector<28x128xf32>
    %c0_4 = arith.constant 0 : index
    %c0_5 = arith.constant 0 : index
    %23 = vector.load %arg3[%c0_4, %c0_5] : memref<28x128xf32, #tpu.memory_space<vmem>>, vector<28x128xf32>
    tpu.vector_store %arg3[%c0_4, %c0_5], %22 {strides = array<i32>} : memref<28x128xf32, #tpu.memory_space<vmem>>, vector<28x128xf32>,
    return
  }
  func.func @transform_0(%arg0: i32) -> (i32, i32) {
    %c0_i32 = arith.constant 0 : i32
    %c0_i32_0 = arith.constant 0 : i32
    return %c0_i32, %arg0 : i32, i32
  }
  func.func @transform_1(%arg0: i32) -> (i32, i32) {
    %c0_i32 = arith.constant 0 : i32
    %c0_i32_0 = arith.constant 0 : i32
    %c0_i32_1 = arith.constant 0 : i32
    return %c0_i32, %c0_i32_0 : i32, i32
  }
  func.func @transform_2(%arg0: i32) -> (i32, i32) {
    %c0_i32 = arith.constant 0 : i32
    %c0_i32_0 = arith.constant 0 : i32
    return %c0_i32, %arg0 : i32, i32
  }
}

</mosaic_0001>

<llo_original>
// kernel: tpu_custom_call.1
$region0: #{tpu_custom_call.1}
  #allocation0 [shape = 'u32[]', space=smem, size = 0x4, offset = 0x4, fixed_abs, tag = 'smem constant byte address 0x4 - core index']
  #allocation1 [shape = 'u32[144,128]{1,0:T(1,128)}', space=vmem, size = 0x12000, scoped, tag = 'internal scratch']
  %s0 = inlined_call_operand.hbm [shape: s32[3,128], index: 0, kind: input, shape index: {}]
  %s1 = inlined_call_operand.hbm [shape: f32[28,38], index: 1, kind: input, shape index: {}]
  %s2 = inlined_call_operand.hbm [shape: f32[28,128], index: 2, kind: output, shape index: {}]
  %s3 = sld [smem:[#allocation0]]
  $region26: #{tpu_custom_call.1} parent=0
    _
  %s5 = ssub.s32 1, %s3
  %s6 = scalar_select 0, %s5, %s3
  $region1: #{tpu_custom_call.1} parent=0
    #allocation2 [shape = 'u8[2048]{0}', space=vmem, size = 0x800, scoped, tag = 'input window, operand 0, single buffered']
    #allocation3 [shape = 's32[1]{0}', space=sflag, size = 0x4, scoped, tag = 'scoped memory for tpu_custom_call.1']
    #allocation4 [shape = 's32[1]{0}', space=sflag, size = 0x4, scoped, tag = 'scoped memory for tpu_custom_call.1']
    #allocation5 [shape = 'u8[16384]{0}', space=vmem, size = 0x4000, scoped, tag = 'input window, operand 1, single buffered']
    #allocation6 [shape = 's32[1]{0}', space=sflag, size = 0x4, scoped, tag = 'scoped memory for tpu_custom_call.1']
    #allocation7 [shape = 'u8[16384]{0}', space=vmem, size = 0x4000, scoped, tag = 'output window, operand 0, single buffered']
    %7 = vsyncpa [#allocation3], 0
    %8 = vsyncpa [#allocation6], 0
    %9 = vsyncpa [#allocation4], 0
    // Predicated region
    $region2: #{tpu_custom_call.1} parent=1 // pred_check
      _
    $region3: #{tpu_custom_call.1} parent=1 // pred_check_branch
      %11 = sbr.rel (0) target = $region5
    $region4: #{tpu_custom_call.1} parent=1 // pred_region
      %s13 = ssub.s32 64, 64
      %14 = vsyncadd [#allocation3], %s13
      %s16 = sshll.u32 [#allocation2], 4
      %s17 = int_to_ptr.vmem [resolvable:$true] %s16
      %19 = dma.hbm_to_vmem [thread:$0]  %s0, 64, %s17, [#allocation3]
    $region5: #{tpu_custom_call.1} parent=1 // pred_fallthru
      _
    // Predicated region
    $region6: #{tpu_custom_call.1} parent=1 // pred_check
      _
    $region7: #{tpu_custom_call.1} parent=1 // pred_check_branch
      %21 = sbr.rel (0) target = $region9
    $region8: #{tpu_custom_call.1} parent=1 // pred_region
      %s23 = ssub.s32 512, 512
      %24 = vsyncadd [#allocation6], %s23
      %s25 = sshll.u32 [#allocation5], 4
      %s26 = int_to_ptr.vmem [resolvable:$true] %s25
      %31 = dma.hbm_to_vmem [thread:$0]  %s1, 512, %s26, [#allocation6], 128, 128, 8
    $region9: #{tpu_custom_call.1} parent=1 // pred_fallthru
      _
    // Predicated region
    $region10: #{tpu_custom_call.1} parent=1 // pred_check
      _
    $region11: #{tpu_custom_call.1} parent=1 // pred_check_branch
      %33 = sbr.rel (0) target = $region13
    $region12: #{tpu_custom_call.1} parent=1 // pred_region
      %34 = dma.done [#allocation3], 64
    $region13: #{tpu_custom_call.1} parent=1 // pred_fallthru
      _
    // Predicated region
    $region14: #{tpu_custom_call.1} parent=1 // pred_check
      _
    $region15: #{tpu_custom_call.1} parent=1 // pred_check_branch
      %36 = sbr.rel (0) target = $region17
    $region16: #{tpu_custom_call.1} parent=1 // pred_region
      %37 = dma.done [#allocation6], 512
    $region17: #{tpu_custom_call.1} parent=1 // pred_fallthru
      _
    %v38 = vld [vmem:[#allocation2] sm:$0x7]
    %v39 = vlaneseq
    %v40 = vshrl.u32 %v39, 7
    %v41 = vadd.s32 %v40, 8
    %v42 = vadd.s32 %v40, 16
    %v43 = vadd.s32 %v40, 24
    %v44 = vadd.s32 %v40, 32
    %v45 = vlaneseq
    %v46 = vshrl.u32 %v45, 7
    %v47 = vsub.s32 0, %v46
    %v48 = vrot.slane %v38, %v47
    %vm49 = vcmp.eq.s32.totalorder %v48, %v40
    %vm50 = vcmp.eq.s32.totalorder %v48, %v41
    %vm51 = vcmp.eq.s32.totalorder %v48, %v42
    %vm52 = vcmp.eq.s32.totalorder %v48, %v43
    %vm53 = vcmp.eq.s32.totalorder %v48, %v44
    %v54 = vsel %vm49, 1, 0
    %v55 = vsel %vm50, 1, 0
    %v56 = vsel %vm51, 1, 0
    %v57 = vsel %vm52, 1, 0
    %v58 = vsel %vm53, 1, 0
    %v59 = vcvt.s32.f32 %v54
    %v60 = vcvt.s32.f32 %v55
    %v61 = vcvt.s32.f32 %v56
    %v62 = vcvt.s32.f32 %v57
    %v63 = vcvt.s32.f32 %v58
    %v64 = vadd.f32 %v59, 0.0
    %v65 = vadd.f32 %v60, 0.0
    %v66 = vadd.f32 %v61, 0.0
    %v67 = vadd.f32 %v62, 0.0
    %v68 = vadd.f32 %v63, 0.0
    %v69 = vlaneseq
    %v70 = vshrl.u32 %v69, 7
    %v71 = vsub.s32 1, %v70
    %v72 = vrot.slane %v38, %v71
    %vm73 = vcmp.eq.s32.totalorder %v72, %v40
    %vm74 = vcmp.eq.s32.totalorder %v72, %v41
    %vm75 = vcmp.eq.s32.totalorder %v72, %v42
    %vm76 = vcmp.eq.s32.totalorder %v72, %v43
    %vm77 = vcmp.eq.s32.totalorder %v72, %v44
    %v78 = vsel %vm73, 1, 0
    %v79 = vsel %vm74, 1, 0
    %v80 = vsel %vm75, 1, 0
    %v81 = vsel %vm76, 1, 0
    %v82 = vsel %vm77, 1, 0
    %v83 = vcvt.s32.f32 %v78
    %v84 = vcvt.s32.f32 %v79
    %v85 = vcvt.s32.f32 %v80
    %v86 = vcvt.s32.f32 %v81
    %v87 = vcvt.s32.f32 %v82
    %v88 = vadd.f32 %v64, %v83
    %v89 = vadd.f32 %v65, %v84
    %v90 = vadd.f32 %v66, %v85
    %v91 = vadd.f32 %v67, %v86
    %v92 = vadd.f32 %v68, %v87
    %v93 = vlaneseq
    %v94 = vshrl.u32 %v93, 7
    %v95 = vsub.s32 2, %v94
    %v96 = vrot.slane %v38, %v95
    %vm97 = vcmp.eq.s32.totalorder %v96, %v40
    %vm98 = vcmp.eq.s32.totalorder %v96, %v41
    %vm99 = vcmp.eq.s32.totalorder %v96, %v42
    %vm100 = vcmp.eq.s32.totalorder %v96, %v43
    %vm101 = vcmp.eq.s32.totalorder %v96, %v44
    %v102 = vsel %vm97, 1, 0
    %v103 = vsel %vm98, 1, 0
    %v104 = vsel %vm99, 1, 0
    %v105 = vsel %vm100, 1, 0
    %v106 = vsel %vm101, 1, 0
    %v107 = vcvt.s32.f32 %v102
    %v108 = vcvt.s32.f32 %v103
    %v109 = vcvt.s32.f32 %v104
    %v110 = vcvt.s32.f32 %v105
    %v111 = vcvt.s32.f32 %v106
    %v112 = vadd.f32 %v88, %v107
    %v113 = vadd.f32 %v89, %v108
    %v114 = vadd.f32 %v90, %v109
    %v115 = vadd.f32 %v91, %v110
    %v116 = vadd.f32 %v92, %v111
    %v117 = vld [vmem:[#allocation5] sm:$0xff]
    %v118 = vld [vmem:[#allocation5 + $0x8] sm:$0xff]
    %v119 = vld [vmem:[#allocation5 + $0x10] sm:$0xff]
    %v120 = vld [vmem:[#allocation5 + $0x18] sm:$0xf]
    %vm121 = vcmask 310272
    %v123 = vsel %vm121, %v117, 0
    %v126 = vsel %vm121, %v118, 0
    %v129 = vsel %vm121, %v119, 0
    %v132 = vsel %vm121, %v120, 0
    %vm134 = vcmask 1045504
    %v136 = vsel %vm134, %v116, 0
    %138 = vmatprep.subr.mxu0 0.0
    %139 = vmatpush1.msra.mxu0 %v112
    %140 = vmatprep.subr.mxu0 0.0
    %141 = vmatpush1.msra.mxu0 %v113
    %142 = vmatprep.subr.mxu0 0.0
    %143 = vmatpush1.msra.mxu0 %v114
    %144 = vmatprep.subr.mxu0 0.0
    %145 = vmatpush1.msra.mxu0 %v115
    %146 = vmatprep.subr.mxu0 0.0
    %147 = vmatpush1.msra.mxu0 %v136
    %148 = vmatprep.subr.mxu0 0.0
    %149 = vmatpush1.msra.mxu0 0.0
    %150 = vmatprep.subr.mxu0 0.0
    %151 = vmatpush1.msra.mxu0 0.0
    %152 = vmatprep.subr.mxu0 0.0
    %153 = vmatpush1.msra.mxu0 0.0
    %154 = vmatprep.subr.mxu0 0.0
    %155 = vmatpush1.msra.mxu0 0.0
    %156 = vmatprep.subr.mxu0 0.0
    %157 = vmatpush1.msra.mxu0 0.0
    %158 = vmatprep.subr.mxu0 0.0
    %159 = vmatpush1.msra.mxu0 0.0
    %160 = vmatprep.subr.mxu0 0.0
    %161 = vmatpush1.msra.mxu0 0.0
    %162 = vmatprep.subr.mxu0 0.0
    %163 = vmatpush1.msra.mxu0 0.0
    %164 = vmatprep.subr.mxu0 0.0
    %165 = vmatpush1.msra.mxu0 0.0
    %166 = vmatprep.subr.mxu0 0.0
    %167 = vmatpush1.msra.mxu0 0.0
    %168 = vmatprep.subr.mxu0 0.0
    %169 = vmatpush1.msra.mxu0 0.0
    %170 = vmatprep.subr.mxu0 0.0
    %171 = vmatpush1.msra.mxu0 0.0
    %172 = vmatprep.subr.mxu0 0.0
    %173 = vmatpush1.msra.mxu0 0.0
    %174 = vmatprep.subr.mxu0 0.0
    %175 = vmatpush1.msra.mxu0 0.0
    %176 = vmatprep.subr.mxu0 0.0
    %177 = vmatpush1.msra.mxu0 0.0
    %178 = vmatprep.subr.mxu0 0.0
    %179 = vmatpush1.msra.mxu0 0.0
    %180 = vmatprep.subr.mxu0 0.0
    %181 = vmatpush1.msra.mxu0 0.0
    %182 = vmatprep.subr.mxu0 0.0
    %183 = vmatpush1.msra.mxu0 0.0
    %184 = vmatprep.subr.mxu0 0.0
    %185 = vmatpush1.msra.mxu0 0.0
    %186 = vmatprep.subr.mxu0 0.0
    %187 = vmatpush1.msra.mxu0 0.0
    %188 = vmatprep.subr.mxu0 0.0
    %189 = vmatpush1.msra.mxu0 0.0
    %190 = vmatprep.subr.mxu0 0.0
    %191 = vmatpush1.msra.mxu0 0.0
    %192 = vmatprep.subr.mxu0 0.0
    %193 = vmatpush1.msra.mxu0 0.0
    %194 = vmatprep.subr.mxu0 0.0
    %195 = vmatpush1.msra.mxu0 0.0
    %196 = vmatprep.subr.mxu0 0.0
    %197 = vmatpush1.msra.mxu0 0.0
    %198 = vmatprep.subr.mxu0 0.0
    %199 = vmatpush1.msra.mxu0 0.0
    %200 = vmatprep.subr.mxu0 0.0
    %201 = vmatpush1.msra.mxu0 0.0
    %202 = vmatprep.mubr.f32.mxu0 0.0
    %203 = vmatmul.mubr.f32.gmra.mrb[0].mxu0 %v123
    %v204 = vpop.f32.mrb[0].mxu0
    %v205 = vadd.f32 0.0, %v204
    %v206 = vpop.f32.mrb[0].mxu0
    %207 = vmatprep.mubr.f32.mxu0 0.0
    %208 = vmatmul.mubr.f32.gmra.mrb[0].mxu0 %v126
    %v209 = vpop.f32.mrb[0].mxu0
    %v210 = vadd.f32 0.0, %v209
    %v211 = vpop.f32.mrb[0].mxu0
    %212 = vmatprep.mubr.f32.mxu0 0.0
    %213 = vmatmul.mubr.f32.gmra.mrb[0].mxu0 %v129
    %v214 = vpop.f32.mrb[0].mxu0
    %v215 = vadd.f32 0.0, %v214
    %v216 = vpop.f32.mrb[0].mxu0
    %217 = vmatprep.mubr.f32.mxu0 0.0
    %218 = vmatmul.mubr.f32.gmra.mrb[0].mxu0 %v132
    %v219 = vpop.f32.mrb[0].mxu0
    %v220 = vadd.f32 0.0, %v219
    %v221 = vpop.f32.mrb[0].mxu0
    %222 = vdwg.mxu0
    %223 = vst [vmem:[#allocation7] sm:$0xff] %v205
    %224 = vst [vmem:[#allocation7 + $0x8] sm:$0xff] %v210
    %225 = vst [vmem:[#allocation7 + $0x10] sm:$0xff] %v215
    %226 = vst [vmem:[#allocation7 + $0x18] sm:$0xf] %v220
    // Predicated region
    $region18: #{tpu_custom_call.1} parent=1 // pred_check
      _
    $region19: #{tpu_custom_call.1} parent=1 // pred_check_branch
      %228 = sbr.rel (0) target = $region21
    $region20: #{tpu_custom_call.1} parent=1 // pred_region
      %s230 = ssub.s32 512, 512
      %231 = vsyncadd [#allocation4], %s230
      %s232 = sshll.u32 [#allocation7], 4
      %s233 = int_to_ptr.vmem [resolvable:$true] %s232
      %238 = dma.vmem_to_hbm [thread:$0]  %s233, 512, %s2, [#allocation4], 128, 128, 8
    $region21: #{tpu_custom_call.1} parent=1 // pred_fallthru
      _
    // Predicated region
    $region22: #{tpu_custom_call.1} parent=1 // pred_check
      _
    $region23: #{tpu_custom_call.1} parent=1 // pred_check_branch
      %240 = sbr.rel (0) target = $region25
    $region24: #{tpu_custom_call.1} parent=1 // pred_region
      %241 = dma.done [#allocation4], 512
    $region25: #{tpu_custom_call.1} parent=1 // pred_fallthru
      _
    %242 = vsyncpa [#allocation3], 1
    %243 = vsyncpa [#allocation6], 1
    %244 = vsyncpa [#allocation4], 1

</llo_original>
